<compile_context>
chip_gen: v5e
topology: v5e:2x2
jax: 0.10.0
libtpu: 0.0.40
codegen_flags: <defaults>
</compile_context>

<pallas_src>
import jax
import jax.numpy as jnp
from jax.experimental import pallas as pl
from jax.experimental.pallas import tpu as pltpu

_LANES = 128


def _make_focal_kernel(C, tile_r, gamma, hw, tiles_per_group, alpha_vals,
                       need_mask):
    gamma = float(gamma)
    g_int = int(gamma) if (gamma.is_integer() and 0.0 <= gamma <= 16.0) else None

    def kernel(x_ref, t_ref, o_ref, acc_ref):
        p = pl.program_id(1)          # pixel-tile group (parallel)
        j = pl.program_id(2)          # tile within the group (arbitrary/reduce)

        @pl.when(j == 0)
        def _():
            acc_ref[...] = jnp.zeros_like(acc_ref)

        t = t_ref[0, 0]                               # (tile_r, 128) int32

        # ---- Pass 1: running class max + one-hot gather of the target logit.
        # Class axis is a major dim, so these are C dense (tile_r,128) VPU ops
        # in the input dtype (no upcast of the big slabs, no XLU reductions).
        x0 = x_ref[0, 0]
        m = x0
        xt = x0                                       # target class 0 default
        for c in range(1, C):
            xc = x_ref[0, c]
            m = jnp.maximum(m, xc)
            xt = jnp.where(t == c, xc, xt)

        # ---- Pass 2: sum of exp over classes, accumulated in f32.
        se = jnp.zeros((tile_r, _LANES), jnp.float32)
        for c in range(C):
            se = se + jnp.exp((x_ref[0, c] - m).astype(jnp.float32))

        logpt = xt.astype(jnp.float32) - m.astype(jnp.float32) - jnp.log(se)
        # NOTE: pt is taken from the UN-scaled logpt (matches the PyTorch
        # module: alpha multiplies logpt *after* pt = logpt.exp()).  Keep it.
        pt = jnp.exp(logpt)

        if alpha_vals is not None:
            # alpha is a static hyper-parameter -> baked-in immediates.
            at = jnp.zeros((tile_r, _LANES), jnp.float32)
            for c, a_c in enumerate(alpha_vals):
                at = jnp.where(t == c, jnp.float32(a_c), at)
            logpt = logpt * at

        one_minus_pt = 1.0 - pt
        if g_int is not None:
            # Integer gamma (common case gamma=2): repeated multiply, no exp/log.
            w = None
            for _ in range(g_int):
                w = one_minus_pt if w is None else w * one_minus_pt
        else:
            w = jnp.power(one_minus_pt, jnp.float32(gamma))

        loss = -logpt if w is None else -(w * logpt)  # (tile_r, 128) f32

        if need_mask:
            # Only emitted when the tiling does not cover H*W exactly: masks
            # lane padding, ragged edge rows and duplicated (clamped) blocks.
            # Keep the select (not a multiply) — padded/garbage columns can be
            # non-finite and must not leak NaNs into the sum.
            row = jax.lax.broadcasted_iota(jnp.int32, (tile_r, _LANES), 0)
            lane = jax.lax.broadcasted_iota(jnp.int32, (tile_r, _LANES), 1)
            base_row = (p * tiles_per_group + j) * tile_r
            pix = (base_row + row) * _LANES + lane
            loss = jnp.where(pix < hw, loss, 0.0)

        acc_ref[...] = acc_ref[...] + loss            # dense VPU add

        @pl.when(j == pl.num_programs(2) - 1)
        def _():
            # Single cross-lane + cross-sublane reduce per (image, group).
            s = jnp.sum(acc_ref[...], axis=1, keepdims=True)   # (tile_r, 1)
            s = jnp.sum(s, axis=0, keepdims=True)              # (1, 1)
            o_ref[...] = s.reshape(1, 1, 1, 1)

    return kernel


def focal_loss(logits_nchw, target_nhw, *, gamma=0.0, alpha=None,
               size_average=True, max_tile_rows=None,
               vmem_budget_bytes=12 * 1024 * 1024):
    """FocalLoss.forward — logits_nchw: (N, C, H, W) float, target_nhw: (N, H, W) int."""
    N, C, H, W = logits_nchw.shape
    HW = H * W

    # alpha handling, mirroring FocalLoss.__init__ (alpha is static -> baked in).
    # TODO(synk): scalar-float alpha builds a 2-entry table ([alpha, 1-alpha]);
    # for C > 2 any target class >= 2 gets alpha_t = 0 (the original PyTorch
    # code would actually fault on that gather).
    if alpha is None:
        alpha_vals = None
    elif isinstance(alpha, (float, int)) and not isinstance(alpha, bool):
        alpha_vals = (float(alpha), 1.0 - float(alpha))
    elif isinstance(alpha, (list, tuple)):
        alpha_vals = tuple(float(a) for a in alpha)
    else:
        alpha_vals = tuple(float(a) for a in
                           jax.device_get(jnp.asarray(alpha)).reshape(-1))

    # ---- Layout: pixels -> (rows, 128) so the class axis is a MAJOR dim and
    # every per-pixel array in the kernel is a dense (tile_r, 128) slab.
    n_rows = pl.cdiv(HW, _LANES)
    hw_pad = n_rows * _LANES

    x = logits_nchw.reshape(N, C, HW)                 # free view (class-major)
    t = target_nhw.reshape(N, 1, HW).astype(jnp.int32)
    if hw_pad != HW:
        # Only when H*W is not 128-aligned: one pad copy; padded pixels are
        # masked out inside the kernel (zeros are NaN-safe for the softmax).
        x = jnp.pad(x, ((0, 0), (0, 0), (0, hw_pad - HW)))
        t = jnp.pad(t, ((0, 0), (0, 0), (0, hw_pad - HW)))
    x = x.reshape(N, C, n_rows, _LANES)               # free view when aligned
    t = t.reshape(N, 1, n_rows, _LANES)

    # ---- Tile sizing from C, dtype and a v5e-safe scoped-VMEM budget.
    itemsize = jnp.dtype(x.dtype).itemsize
    bytes_per_row = (2 * C * _LANES * itemsize        # double-buffered logits
                     + (C + 8) * _LANES * 4           # f32 temps (exp terms etc.)
                     + 2 * _LANES * 4                 # double-buffered targets
                     + _LANES * 4)                    # accumulator scratch
    tile_r = max(8, vmem_budget_bytes // bytes_per_row)
    tile_r = min(tile_r, 512)                         # 64K pixels/step already hides pipeline overhead
    if max_tile_rows is not None:
        tile_r = min(tile_r, int(max_tile_rows))
    tile_r = max(8, (tile_r // 8) * 8)                # sublane-aligned
    if tile_r >= n_rows:
        tile_r = n_rows                               # full-extent block (always legal)

    n_tiles = pl.cdiv(n_rows, tile_r)

    # ---- Split pixel tiles into 2 parallel groups so v7x's second TensorCore
    # is used even when N == 1 (harmless on 1-TC chips).
    num_groups = 2 if n_tiles >= 2 else 1
    tiles_per_group = pl.cdiv(n_tiles, num_groups)

    need_mask = (num_groups * tiles_per_group * tile_r * _LANES != HW)

    def row_block(p, j):
        b = p * tiles_per_group + j
        if num_groups * tiles_per_group > n_tiles:
            # Keep DMAs in bounds; duplicated blocks are fully masked in-kernel
            # (their nominal pixel indices are >= HW).
            b = jnp.minimum(b, n_tiles - 1)
        return b

    x_map = lambda n, p, j: (n, 0, row_block(p, j), 0)
    t_map = lambda n, p, j: (n, 0, row_block(p, j), 0)
    o_map = lambda n, p, j: (n, p, 0, 0)

    kernel = _make_focal_kernel(C, tile_r, gamma, HW, tiles_per_group,
                                alpha_vals, need_mask)

    partials = pl.pallas_call(
        kernel,
        out_shape=jax.ShapeDtypeStruct((N, num_groups, 1, 1), jnp.float32),
        grid_spec=pltpu.PrefetchScalarGridSpec(
            num_scalar_prefetch=0,
            grid=(N, num_groups, tiles_per_group),
            in_specs=[
                pl.BlockSpec((1, C, tile_r, _LANES), x_map),   # logits block
                pl.BlockSpec((1, 1, tile_r, _LANES), t_map),   # targets block
            ],
            out_specs=pl.BlockSpec((1, 1, 1, 1), o_map),
            scratch_shapes=[pltpu.VMEM((tile_r, _LANES), jnp.float32)],
        ),
        compiler_params=pltpu.CompilerParams(
            dimension_semantics=("parallel", "parallel", "arbitrary")),
    )(x, t)

    total = jnp.sum(partials)
    if size_average:
        return total / jnp.float32(N * HW)
    return total


def _reference_focal_loss(logits_nchw, target_nhw, *, gamma, alpha, size_average):
    N, C, H, W = logits_nchw.shape
    xr = jnp.transpose(logits_nchw, (0, 2, 3, 1)).reshape(-1, C).astype(jnp.float32)
    tr = target_nhw.reshape(-1).astype(jnp.int32)
    logp = jax.nn.log_softmax(xr, axis=1)
    logpt = jnp.take_along_axis(logp, tr[:, None], axis=1)[:, 0]
    pt = jnp.exp(logpt)
    if alpha is not None:
        a = jnp.asarray(alpha, dtype=jnp.float32)
        logpt = logpt * a[tr]
    loss = -1.0 * (1.0 - pt) ** gamma * logpt
    return loss.mean() if size_average else loss.sum()


if __name__ == "__main__":
    key = jax.random.PRNGKey(0)
    keys = jax.random.split(key, 8)

    # Test 1: per-class alpha, integer gamma, mean reduction, 128-aligned HW.
    N, C, H, W = 2, 4, 16, 16
    logits = jax.random.normal(keys[0], (N, C, H, W), dtype=jnp.float32)
    target = jax.random.randint(keys[1], (N, H, W), 0, C, dtype=jnp.int32)
    alpha = [0.25, 0.75, 0.5, 0.5]
    out = focal_loss(logits, target, gamma=2.0, alpha=alpha, size_average=True)
    out = jax.block_until_ready(out)
    ref = _reference_focal_loss(logits, target, gamma=2.0, alpha=alpha,
                                size_average=True)
    assert jnp.allclose(out, ref, rtol=1e-5, atol=1e-5), (out, ref)

    # Test 2: no alpha, fractional gamma, sum reduction, H*W not 128-aligned
    # (exercises the pad + mask path).
    N2, C2, H2, W2 = 2, 3, 15, 20      # HW = 300
    logits2 = jax.random.normal(keys[2], (N2, C2, H2, W2), dtype=jnp.float32)
    target2 = jax.random.randint(keys[3], (N2, H2, W2), 0, C2, dtype=jnp.int32)
    out2 = focal_loss(logits2, target2, gamma=1.5, alpha=None, size_average=False)
    out2 = jax.block_until_ready(out2)
    ref2 = _reference_focal_loss(logits2, target2, gamma=1.5, alpha=None,
                                 size_average=False)
    assert jnp.allclose(out2, ref2, rtol=1e-5, atol=1e-4), (out2, ref2)

    # Test 3: N=1 (exercises the 2-group pixel split), scalar alpha with C=2,
    # multi-tile accumulation, exactly tile-aligned (mask elided).
    N3, C3, H3, W3 = 1, 2, 64, 64      # HW = 4096 -> 32 rows -> 4 tiles of 8
    logits3 = jax.random.normal(keys[4], (N3, C3, H3, W3), dtype=jnp.float32)
    target3 = jax.random.randint(keys[5], (N3, H3, W3), 0, C3, dtype=jnp.int32)
    out3 = focal_loss(logits3, target3, gamma=2.0, alpha=0.25,
                      size_average=True, max_tile_rows=8)
    out3 = jax.block_until_ready(out3)
    ref3 = _reference_focal_loss(logits3, target3, gamma=2.0,
                                 alpha=[0.25, 0.75], size_average=True)
    assert jnp.allclose(out3, ref3, rtol=1e-5, atol=1e-5), (out3, ref3)

    # Test 4: default gamma=0, odd tile count (exercises the clamped duplicate
    # block in the 2-group split) plus ragged edge masking.
    N4, C4, H4, W4 = 1, 3, 32, 68      # HW = 2176 -> 17 rows -> 3 tiles of 8
    logits4 = jax.random.normal(keys[6], (N4, C4, H4, W4), dtype=jnp.float32)
    target4 = jax.random.randint(keys[7], (N4, H4, W4), 0, C4, dtype=jnp.int32)
    out4 = focal_loss(logits4, target4, gamma=0.0, alpha=None,
                      size_average=False, max_tile_rows=8)
    out4 = jax.block_until_ready(out4)
    ref4 = _reference_focal_loss(logits4, target4, gamma=0.0, alpha=None,
                                 size_average=False)
    assert jnp.allclose(out4, ref4, rtol=1e-5, atol=1e-3), (out4, ref4)

    print("KERNEL_OK")
</pallas_src>

<mosaic_0001>
module attributes {stable_mosaic.version = 11 : i64} {
  func.func @kernel(%arg0: i32, %arg1: i32, %arg2: i32, %arg3: memref<1x4x2x128xf32, #tpu.memory_space<vmem>>, %arg4: memref<1x1x2x128xi32, #tpu.memory_space<vmem>>, %arg5: memref<1x1x1x1xf32, #tpu.memory_space<vmem>>, %arg6: memref<2x128xf32, #tpu.memory_space<vmem>>) attributes {dimension_semantics = [#tpu.dimension_semantics<parallel>, #tpu.dimension_semantics<parallel>, #tpu.dimension_semantics<arbitrary>], iteration_bounds = array<i64: 2, 1, 1>, scalar_prefetch = 0 : i64, scratch_operands = 1 : i64, tpu.core_type = #tpu.core_type<tc>, window_params = [{transform_indices = @transform_0, window_bounds = array<i64: 1, 4, 2, 128>}, {transform_indices = @transform_1, window_bounds = array<i64: 1, 1, 2, 128>}, {transform_indices = @transform_2, window_bounds = array<i64: 1, 1, 1, 1>}]} {
    %c0_i32 = arith.constant 0 : i32
    %0 = arith.cmpi eq, %arg2, %c0_i32 : i32
    %1 = arith.extui %0 : i1 to i32
    %c0_i32_0 = arith.constant 0 : i32
    %2 = arith.cmpi ne, %1, %c0_i32_0 : i32
    scf.if %2 {
      %cst_50 = arith.constant 0.000000e+00 : f32
      %80 = vector.broadcast %cst_50 : f32 to vector<2x128xf32>
      %c0_51 = arith.constant 0 : index
      %c0_52 = arith.constant 0 : index
      %81 = vector.load %arg6[%c0_51, %c0_52] : memref<2x128xf32, #tpu.memory_space<vmem>>, vector<2x128xf32>
      tpu.vector_store %arg6[%c0_51, %c0_52], %80 {strides = array<i32>} : memref<2x128xf32, #tpu.memory_space<vmem>>, vector<2x128xf32>,
    } else {
    }
    %c0 = arith.constant 0 : index
    %c0_1 = arith.constant 0 : index
    %c0_2 = arith.constant 0 : index
    %c0_3 = arith.constant 0 : index
    %3 = vector.load %arg4[%c0, %c0_1, %c0_2, %c0_3] : memref<1x1x2x128xi32, #tpu.memory_space<vmem>>, vector<1x1x2x128xi32>
    %4 = vector.shape_cast %3 : vector<1x1x2x128xi32> to vector<2x128xi32>
    %c0_4 = arith.constant 0 : index
    %c0_5 = arith.constant 0 : index
    %c0_6 = arith.constant 0 : index
    %c0_7 = arith.constant 0 : index
    %5 = vector.load %arg3[%c0_4, %c0_5, %c0_6, %c0_7] : memref<1x4x2x128xf32, #tpu.memory_space<vmem>>, vector<1x1x2x128xf32>
    %6 = vector.shape_cast %5 : vector<1x1x2x128xf32> to vector<2x128xf32>
    %c0_8 = arith.constant 0 : index
    %c1 = arith.constant 1 : index
    %c0_9 = arith.constant 0 : index
    %c0_10 = arith.constant 0 : index
    %7 = vector.load %arg3[%c0_8, %c1, %c0_9, %c0_10] : memref<1x4x2x128xf32, #tpu.memory_space<vmem>>, vector<1x1x2x128xf32>
    %8 = vector.shape_cast %7 : vector<1x1x2x128xf32> to vector<2x128xf32>
    %9 = arith.maximumf %6, %8 : vector<2x128xf32>
    %c1_i32 = arith.constant 1 : i32
    %10 = vector.broadcast %c1_i32 : i32 to vector<2x128xi32>
    %11 = arith.cmpi eq, %4, %10 : vector<2x128xi32>
    %12 = arith.select %11, %8, %6 : vector<2x128xi1>, vector<2x128xf32>
    %c0_11 = arith.constant 0 : index
    %c2 = arith.constant 2 : index
    %c0_12 = arith.constant 0 : index
    %c0_13 = arith.constant 0 : index
    %13 = vector.load %arg3[%c0_11, %c2, %c0_12, %c0_13] : memref<1x4x2x128xf32, #tpu.memory_space<vmem>>, vector<1x1x2x128xf32>
    %14 = vector.shape_cast %13 : vector<1x1x2x128xf32> to vector<2x128xf32>
    %15 = arith.maximumf %9, %14 : vector<2x128xf32>
    %c2_i32 = arith.constant 2 : i32
    %16 = vector.broadcast %c2_i32 : i32 to vector<2x128xi32>
    %17 = arith.cmpi eq, %4, %16 : vector<2x128xi32>
    %18 = arith.select %17, %14, %12 : vector<2x128xi1>, vector<2x128xf32>
    %c0_14 = arith.constant 0 : index
    %c3 = arith.constant 3 : index
    %c0_15 = arith.constant 0 : index
    %c0_16 = arith.constant 0 : index
    %19 = vector.load %arg3[%c0_14, %c3, %c0_15, %c0_16] : memref<1x4x2x128xf32, #tpu.memory_space<vmem>>, vector<1x1x2x128xf32>
    %20 = vector.shape_cast %19 : vector<1x1x2x128xf32> to vector<2x128xf32>
    %21 = arith.maximumf %15, %20 : vector<2x128xf32>
    %c3_i32 = arith.constant 3 : i32
    %22 = vector.broadcast %c3_i32 : i32 to vector<2x128xi32>
    %23 = arith.cmpi eq, %4, %22 : vector<2x128xi32>
    %24 = arith.select %23, %20, %18 : vector<2x128xi1>, vector<2x128xf32>
    %cst = arith.constant 0.000000e+00 : f32
    %25 = vector.broadcast %cst : f32 to vector<2x128xf32>
    %c0_17 = arith.constant 0 : index
    %c0_18 = arith.constant 0 : index
    %c0_19 = arith.constant 0 : index
    %c0_20 = arith.constant 0 : index
    %26 = vector.load %arg3[%c0_17, %c0_18, %c0_19, %c0_20] : memref<1x4x2x128xf32, #tpu.memory_space<vmem>>, vector<1x1x2x128xf32>
    %27 = vector.shape_cast %26 : vector<1x1x2x128xf32> to vector<2x128xf32>
    %28 = arith.subf %27, %21 : vector<2x128xf32>
    %29 = math.exp %28 : vector<2x128xf32>
    %30 = arith.addf %25, %29 : vector<2x128xf32>
    %c0_21 = arith.constant 0 : index
    %c1_22 = arith.constant 1 : index
    %c0_23 = arith.constant 0 : index
    %c0_24 = arith.constant 0 : index
    %31 = vector.load %arg3[%c0_21, %c1_22, %c0_23, %c0_24] : memref<1x4x2x128xf32, #tpu.memory_space<vmem>>, vector<1x1x2x128xf32>
    %32 = vector.shape_cast %31 : vector<1x1x2x128xf32> to vector<2x128xf32>
    %33 = arith.subf %32, %21 : vector<2x128xf32>
    %34 = math.exp %33 : vector<2x128xf32>
    %35 = arith.addf %30, %34 : vector<2x128xf32>
    %c0_25 = arith.constant 0 : index
    %c2_26 = arith.constant 2 : index
    %c0_27 = arith.constant 0 : index
    %c0_28 = arith.constant 0 : index
    %36 = vector.load %arg3[%c0_25, %c2_26, %c0_27, %c0_28] : memref<1x4x2x128xf32, #tpu.memory_space<vmem>>, vector<1x1x2x128xf32>
    %37 = vector.shape_cast %36 : vector<1x1x2x128xf32> to vector<2x128xf32>
    %38 = arith.subf %37, %21 : vector<2x128xf32>
    %39 = math.exp %38 : vector<2x128xf32>
    %40 = arith.addf %35, %39 : vector<2x128xf32>
    %c0_29 = arith.constant 0 : index
    %c3_30 = arith.constant 3 : index
    %c0_31 = arith.constant 0 : index
    %c0_32 = arith.constant 0 : index
    %41 = vector.load %arg3[%c0_29, %c3_30, %c0_31, %c0_32] : memref<1x4x2x128xf32, #tpu.memory_space<vmem>>, vector<1x1x2x128xf32>
    %42 = vector.shape_cast %41 : vector<1x1x2x128xf32> to vector<2x128xf32>
    %43 = arith.subf %42, %21 : vector<2x128xf32>
    %44 = math.exp %43 : vector<2x128xf32>
    %45 = arith.addf %40, %44 : vector<2x128xf32>
    %46 = arith.subf %24, %21 : vector<2x128xf32>
    %47 = math.log %45 : vector<2x128xf32>
    %48 = arith.subf %46, %47 : vector<2x128xf32>
    %49 = math.exp %48 : vector<2x128xf32>
    %cst_33 = arith.constant 0.000000e+00 : f32
    %50 = vector.broadcast %cst_33 : f32 to vector<2x128xf32>
    %c0_i32_34 = arith.constant 0 : i32
    %51 = vector.broadcast %c0_i32_34 : i32 to vector<2x128xi32>
    %52 = arith.cmpi eq, %4, %51 : vector<2x128xi32>
    %cst_35 = arith.constant 2.500000e-01 : f32
    %53 = vector.broadcast %cst_35 : f32 to vector<2x128xf32>
    %54 = arith.select %52, %53, %50 : vector<2x128xi1>, vector<2x128xf32>
    %c1_i32_36 = arith.constant 1 : i32
    %55 = vector.broadcast %c1_i32_36 : i32 to vector<2x128xi32>
    %56 = arith.cmpi eq, %4, %55 : vector<2x128xi32>
    %cst_37 = arith.constant 7.500000e-01 : f32
    %57 = vector.broadcast %cst_37 : f32 to vector<2x128xf32>
    %58 = arith.select %56, %57, %54 : vector<2x128xi1>, vector<2x128xf32>
    %c2_i32_38 = arith.constant 2 : i32
    %59 = vector.broadcast %c2_i32_38 : i32 to vector<2x128xi32>
    %60 = arith.cmpi eq, %4, %59 : vector<2x128xi32>
    %cst_39 = arith.constant 5.000000e-01 : f32
    %61 = vector.broadcast %cst_39 : f32 to vector<2x128xf32>
    %62 = arith.select %60, %61, %58 : vector<2x128xi1>, vector<2x128xf32>
    %c3_i32_40 = arith.constant 3 : i32
    %63 = vector.broadcast %c3_i32_40 : i32 to vector<2x128xi32>
    %64 = arith.cmpi eq, %4, %63 : vector<2x128xi32>
    %cst_41 = arith.constant 5.000000e-01 : f32
    %65 = vector.broadcast %cst_41 : f32 to vector<2x128xf32>
    %66 = arith.select %64, %65, %62 : vector<2x128xi1>, vector<2x128xf32>
    %67 = arith.mulf %48, %66 : vector<2x128xf32>
    %cst_42 = arith.constant 1.000000e+00 : f32
    %68 = vector.broadcast %cst_42 : f32 to vector<2x128xf32>
    %69 = arith.subf %68, %49 : vector<2x128xf32>
    %70 = arith.mulf %69, %69 : vector<2x128xf32>
    %71 = arith.mulf %70, %67 : vector<2x128xf32>
    %cst_43 = arith.constant 0.000000e+00 : f32
    %72 = vector.broadcast %cst_43 : f32 to vector<2x128xf32>
    %73 = arith.subf %72, %71 : vector<2x128xf32>
    %c0_44 = arith.constant 0 : index
    %c0_45 = arith.constant 0 : index
    %74 = vector.load %arg6[%c0_44, %c0_45] : memref<2x128xf32, #tpu.memory_space<vmem>>, vector<2x128xf32>
    %75 = arith.addf %74, %73 : vector<2x128xf32>
    %c0_46 = arith.constant 0 : index
    %c0_47 = arith.constant 0 : index
    %76 = vector.load %arg6[%c0_46, %c0_47] : memref<2x128xf32, #tpu.memory_space<vmem>>, vector<2x128xf32>
    tpu.vector_store %arg6[%c0_46, %c0_47], %75 {strides = array<i32>} : memref<2x128xf32, #tpu.memory_space<vmem>>, vector<2x128xf32>,
    %c0_i32_48 = arith.constant 0 : i32
    %77 = arith.cmpi eq, %arg2, %c0_i32_48 : i32
    %78 = arith.extui %77 : i1 to i32
    %c0_i32_49 = arith.constant 0 : i32
    %79 = arith.cmpi ne, %78, %c0_i32_49 : i32
    scf.if %79 {
      %c0_50 = arith.constant 0 : index
      %c0_51 = arith.constant 0 : index
      %80 = vector.load %arg6[%c0_50, %c0_51] : memref<2x128xf32, #tpu.memory_space<vmem>>, vector<2x128xf32>
      %cst_52 = arith.constant dense<0.000000e+00> : vector<2xf32>
      %81 = vector.multi_reduction <add>, %80, %cst_52 [1] : vector<2x128xf32> to vector<2xf32>
      %82 = vector.shape_cast %81 : vector<2xf32> to vector<2x1xf32>
      %cst_53 = arith.constant dense<0.000000e+00> : vector<1xf32>
      %83 = vector.multi_reduction <add>, %82, %cst_53 [0] : vector<2x1xf32> to vector<1xf32>
      %84 = vector.shape_cast %83 : vector<1xf32> to vector<1x1xf32>
      %85 = vector.shape_cast %84 : vector<1x1xf32> to vector<1x1x1x1xf32>
      %c0_54 = arith.constant 0 : index
      %c0_55 = arith.constant 0 : index
      %c0_56 = arith.constant 0 : index
      %c0_57 = arith.constant 0 : index
      %86 = vector.load %arg5[%c0_54, %c0_55, %c0_56, %c0_57] : memref<1x1x1x1xf32, #tpu.memory_space<vmem>>, vector<1x1x1x1xf32>
      tpu.vector_store %arg5[%c0_54, %c0_55, %c0_56, %c0_57], %85 {strides = array<i32>} : memref<1x1x1x1xf32, #tpu.memory_space<vmem>>, vector<1x1x1x1xf32>,
    } else {
    }
    return
  }
  func.func @transform_0(%arg0: i32, %arg1: i32, %arg2: i32) -> (i32, i32, i32, i32) {
    %c1_i32 = arith.constant 1 : i32
    %0 = arith.muli %arg1, %c1_i32 : i32
    %1 = arith.addi %0, %arg2 : i32
    %c0_i32 = arith.constant 0 : i32
    %c0_i32_0 = arith.constant 0 : i32
    %c0_i32_1 = arith.constant 0 : i32
    return %arg0, %c0_i32, %1, %c0_i32_0 : i32, i32, i32, i32
  }
  func.func @transform_1(%arg0: i32, %arg1: i32, %arg2: i32) -> (i32, i32, i32, i32) {
    %c1_i32 = arith.constant 1 : i32
    %0 = arith.muli %arg1, %c1_i32 : i32
    %1 = arith.addi %0, %arg2 : i32
    %c0_i32 = arith.constant 0 : i32
    %c0_i32_0 = arith.constant 0 : i32
    %c0_i32_1 = arith.constant 0 : i32
    return %arg0, %c0_i32, %1, %c0_i32_0 : i32, i32, i32, i32
  }
  func.func @transform_2(%arg0: i32, %arg1: i32, %arg2: i32) -> (i32, i32, i32, i32) {
    %c0_i32 = arith.constant 0 : i32
    %c0_i32_0 = arith.constant 0 : i32
    %c0_i32_1 = arith.constant 0 : i32
    return %arg0, %arg1, %c0_i32, %c0_i32_0 : i32, i32, i32, i32
  }
}

</mosaic_0001>

<llo_original>
// kernel: tpu_custom_call.1
$region0: #{tpu_custom_call.1}
  #allocation0 [shape = 'u32[]', space=smem, size = 0x4, offset = 0x4, fixed_abs, tag = 'smem constant byte address 0x4 - core index']
  #allocation1 [shape = 'u32[72,128]{1,0:T(1,128)}', space=vmem, size = 0x9000, scoped, tag = 'internal scratch']
  #allocation2 [shape = 'f32[2,128]{1,0:T(2,128)}', space=vmem, size = 0x400, scoped, tag = 'scratch operand']
  %s0 = inlined_call_operand.hbm [shape: f32[2,4,2,128], index: 0, kind: input, shape index: {}]
  %s1 = inlined_call_operand.hbm [shape: s32[2,1,2,128], index: 1, kind: input, shape index: {}]
  %s2 = inlined_call_operand.vmem [shape: f32[2,1,1,1], index: 2, kind: output, shape index: {}]
  %s3 = sld [smem:[#allocation0]]
  $region57: #{tpu_custom_call.1} parent=0
    _
  %s5 = ssub.s32 1, %s3
  %s6 = scalar_select 0, %s5, %s3
  $region1: #{tpu_custom_call.1} parent=0
    #allocation3 [shape = 'u8[8192]{0}', space=vmem, size = 0x2000, scoped, tag = 'input window, operand 0']
    #allocation4 [shape = 's32[2]{0}', space=sflag, size = 0x8, scoped, tag = 'scoped memory for tpu_custom_call.1']
    #allocation5 [shape = 'u8[2048]{0}', space=vmem, size = 0x800, scoped, tag = 'input window, operand 1']
    #allocation6 [shape = 's32[2]{0}', space=sflag, size = 0x8, scoped, tag = 'scoped memory for tpu_custom_call.1']
    %7 = vsyncpa [#allocation4], 0
    %s8 = scalar_lea.sflag [#allocation4], 1
    %9 = vsyncpa %s8, 0
    %10 = vsyncpa [#allocation6], 0
    %s11 = scalar_lea.sflag [#allocation6], 1
    %12 = vsyncpa %s11, 0
    loop: start=0, step=1, limit=4
    $region2: #{tpu_custom_call.1} parent=1 // loop_pre_header
      _
    $region3: #{tpu_custom_call.1} parent=1 // loop_header
      %s14 = sphi 0, %s18
      %p15 = scmp.ge.s32.totalorder %s14, 4
      %s21 = sphi 0, %s40
      %s22 = sphi 0, %s36
      %s23 = sphi 0, %s32
      %s24 = sphi 0, %s21
      %s25 = sphi 0, %s22
      %s26 = sphi 0, %s23
      %s27 = sphi 0, %s24
      %s28 = sphi 0, %s25
      %s29 = sphi 0, %s26
      %s47 = sphi 0, %s49
      %s50 = sphi 0, %s47
      %s51 = sphi 0, %s50
      %s67 = sphi 0, %s51
      %s77 = sphi 0, %s79
      %s80 = sphi 0, %s77
      %s81 = sphi 0, %s80
      %s97 = sphi 0, %s81
      %s105 = sphi 0, %s107
      %s108 = sphi 0, %s105
      %s109 = sphi 0, %s108
      %s125 = sphi 0, %s109
    $region4: #{tpu_custom_call.1} parent=1 // loop_header_branch
      %17 = sbr.rel (%p15) target = $region8
    $region5: #{tpu_custom_call.1} parent=1 // loop_body
      %s19 = ssub.s32 %s14, 1
      %s20 = ssub.s32 %s14, 2
      %s30 = sadd.s32 1, %s23
      %p31 = scmp.ge.s32.totalorder %s30, 1
      %s32 = scalar_select %p31, 0, %s30
      %s33 = sadd.s32 1, %s22
      %s34 = scalar_select %p31, %s33, %s22
      %p35 = scmp.ge.s32.totalorder %s34, 1
      %s36 = scalar_select %p35, 0, %s34
      %s37 = sadd.s32 1, %s21
      %s38 = scalar_select %p35, %s37, %s21
      %p39 = scmp.ge.s32.totalorder %s38, 2
      %s40 = scalar_select %p39, 0, %s38
      %s41 = sadd.s32 %s22, %s23
      %s42 = sadd.s32 %s36, %s32
      %s43 = ssub.s32 %s21, %s40
      %s44 = ssub.s32 %s41, %s42
      %s45 = sor.u32 %s43, %s44
      %p46 = scmp.eq.s32.totalorder %s45, 0
      %s48 = sadd.s32 %s47, 1
      %s49 = scalar_select %p46, %s47, %s48
      %p52 = pneg %p46
      %p53 = scmp.eq.s32.totalorder %s14, 1
      %p54 = por %p52, %p53
      %p55 = scmp.ne.s32.totalorder %s47, %s50
      %p56 = scmp.eq.s32.totalorder %s14, 0
      %p57 = por %p55, %p56
      %p58 = scmp.ne.s32.totalorder %s47, %s50
      %p59 = scmp.eq.s32.totalorder %s19, 1
      %p60 = por %p58, %p59
      %p61 = scmp.ne.s32.totalorder %s50, %s51
      %p62 = scmp.eq.s32.totalorder %s19, 0
      %p63 = por %p61, %p62
      %p64 = scmp.ne.s32.totalorder %s50, %s51
      %p65 = scmp.eq.s32.totalorder %s20, 1
      %p66 = por %p64, %p65
      %p68 = scmp.ne.s32.totalorder %s51, %s67
      %p69 = scmp.eq.s32.totalorder %s20, 0
      %p70 = por %p68, %p69
      %s71 = sadd.s32 %s22, %s23
      %s72 = sadd.s32 %s36, %s32
      %s73 = ssub.s32 %s21, %s40
      %s74 = ssub.s32 %s71, %s72
      %s75 = sor.u32 %s73, %s74
      %p76 = scmp.eq.s32.totalorder %s75, 0
      %s78 = sadd.s32 %s77, 1
      %s79 = scalar_select %p76, %s77, %s78
      %p82 = pneg %p76
      %p83 = scmp.eq.s32.totalorder %s14, 1
      %p84 = por %p82, %p83
      %p85 = scmp.ne.s32.totalorder %s77, %s80
      %p86 = scmp.eq.s32.totalorder %s14, 0
      %p87 = por %p85, %p86
      %p88 = scmp.ne.s32.totalorder %s77, %s80
      %p89 = scmp.eq.s32.totalorder %s19, 1
      %p90 = por %p88, %p89
      %p91 = scmp.ne.s32.totalorder %s80, %s81
      %p92 = scmp.eq.s32.totalorder %s19, 0
      %p93 = por %p91, %p92
      %p94 = scmp.ne.s32.totalorder %s80, %s81
      %p95 = scmp.eq.s32.totalorder %s20, 1
      %p96 = por %p94, %p95
      %p98 = scmp.ne.s32.totalorder %s81, %s97
      %p99 = scmp.eq.s32.totalorder %s20, 0
      %p100 = por %p98, %p99
      %s101 = ssub.s32 %s21, %s40
      %s102 = ssub.s32 %s22, %s36
      %s103 = sor.u32 %s101, %s102
      %p104 = scmp.eq.s32.totalorder %s103, 0
      %s106 = sadd.s32 %s105, 1
      %s107 = scalar_select %p104, %s105, %s106
      %p110 = pneg %p104
      %p111 = scmp.eq.s32.totalorder %s14, 1
      %p112 = por %p110, %p111
      %p113 = scmp.ne.s32.totalorder %s105, %s108
      %p114 = scmp.eq.s32.totalorder %s14, 0
      %p115 = por %p113, %p114
      %p116 = scmp.ne.s32.totalorder %s105, %s108
      %p117 = scmp.eq.s32.totalorder %s19, 1
      %p118 = por %p116, %p117
      %p119 = scmp.ne.s32.totalorder %s108, %s109
      %p120 = scmp.eq.s32.totalorder %s19, 0
      %p121 = por %p119, %p120
      %p122 = scmp.ne.s32.totalorder %s108, %s109
      %p123 = scmp.eq.s32.totalorder %s20, 1
      %p124 = por %p122, %p123
      %p126 = scmp.ne.s32.totalorder %s109, %s125
      %p127 = scmp.eq.s32.totalorder %s20, 0
      %p128 = por %p126, %p127
      %p129 = scmp.le.s32.totalorder 1, %s14
      %p130 = scmp.lt.s32.totalorder %s14, 3
      %p131 = pnand %p129, %p130
      %p132 = pneg %p131
      // Predicated region
      $region9: #{tpu_custom_call.1} parent=5 // pred_check
        _
      $region10: #{tpu_custom_call.1} parent=5 // pred_check_branch
        %134 = sbr.rel (%p131) target = $region12
      $region11: #{tpu_custom_call.1} parent=5 // pred_region
        %s135 = ssub.s32 %s14, 1
      $region12: #{tpu_custom_call.1} parent=5 // pred_fallthru
        _
      %p136 = scmp.lt.s32.totalorder %s14, 2
      // Predicated region
      $region13: #{tpu_custom_call.1} parent=5 // pred_check
        %p137 = pneg %p136
      $region14: #{tpu_custom_call.1} parent=5 // pred_check_branch
        %139 = sbr.rel (%p137) target = $region16
      $region15: #{tpu_custom_call.1} parent=5 // pred_region
        // Predicated region
        $region17: #{tpu_custom_call.1} parent=15 // pred_check
          %p140 = pneg %p57
        $region18: #{tpu_custom_call.1} parent=15 // pred_check_branch
          %142 = sbr.rel (%p140) target = $region20
        $region19: #{tpu_custom_call.1} parent=15 // pred_region
          %s143 = sand.u32 %s47, 1
          %s144 = scalar_lea.sflag [#allocation4], %s143
          %s145 = sand.u32 %s47, 1
          %s146 = smul.addr %s145, 8
          %s147 = scalar_lea.vmem [#allocation3], %s146
          %s148 = sadd.s32 %s22, %s23
          %150 = vsyncadd %s144, 0
          %s151 = smul.addr %s21, 4
          %s152 = sadd.s32 %s148, %s151
          %s153 = smul.addr %s152, 2
          %s154 = scalar_lea.hbm %s0, %s153
          %s155 = sshll.u32 %s154, 4
          %s156 = int_to_ptr.hbm [resolvable:$true] %s155
          %s157 = sshll.u32 %s147, 4
          %s158 = int_to_ptr.vmem [resolvable:$true] %s157
          %163 = dma.hbm_to_vmem [thread:$0]  %s156, 128, %s158, %s144, 32, 32, 2
        $region20: #{tpu_custom_call.1} parent=15 // pred_fallthru
          _
        // Predicated region
        $region21: #{tpu_custom_call.1} parent=15 // pred_check
          %p164 = pneg %p87
        $region22: #{tpu_custom_call.1} parent=15 // pred_check_branch
          %166 = sbr.rel (%p164) target = $region24
        $region23: #{tpu_custom_call.1} parent=15 // pred_region
          %s167 = sand.u32 %s77, 1
          %s168 = scalar_lea.sflag [#allocation6], %s167
          %s169 = sand.u32 %s77, 1
          %s170 = smul.addr %s169, 2
          %s171 = scalar_lea.vmem [#allocation5], %s170
          %s172 = sadd.s32 %s22, %s23
          %174 = vsyncadd %s168, 0
          %s175 = sadd.s32 %s172, %s21
          %s176 = smul.addr %s175, 2
          %s177 = scalar_lea.hbm %s1, %s176
          %s179 = sshll.u32 %s177, 4
          %s180 = int_to_ptr.hbm [resolvable:$true] %s179
          %s181 = sshll.u32 %s171, 4
          %s182 = int_to_ptr.vmem [resolvable:$true] %s181
          %184 = dma.hbm_to_vmem [thread:$0]  %s180, 32, %s182, %s168
        $region24: #{tpu_custom_call.1} parent=15 // pred_fallthru
          _
      $region16: #{tpu_custom_call.1} parent=5 // pred_fallthru
        _
      %p185 = scmp.le.s32.totalorder 1, %s14
      %p186 = scmp.lt.s32.totalorder %s14, 3
      %p187 = pnand %p185, %p186
      %p188 = pneg %p187
      // Predicated region
      $region25: #{tpu_custom_call.1} parent=5 // pred_check
        _
      $region26: #{tpu_custom_call.1} parent=5 // pred_check_branch
        %190 = sbr.rel (%p187) target = $region28
      $region27: #{tpu_custom_call.1} parent=5 // pred_region
        %s191 = ssub.s32 %s14, 1
        %s192 = sand.u32 %s50, 1
        %s193 = scalar_lea.sflag [#allocation4], %s192
        %s194 = sand.u32 %s50, 1
        %s195 = smul.addr %s194, 8
        %s196 = scalar_lea.vmem [#allocation3], %s195
        // Predicated region
        $region29: #{tpu_custom_call.1} parent=27 // pred_check
          %p197 = pneg %p63
        $region30: #{tpu_custom_call.1} parent=27 // pred_check_branch
          %199 = sbr.rel (%p197) target = $region32
        $region31: #{tpu_custom_call.1} parent=27 // pred_region
          %201 = dma.done %s193, 128
        $region32: #{tpu_custom_call.1} parent=27 // pred_fallthru
          _
        %s202 = sand.u32 %s80, 1
        %s203 = scalar_lea.sflag [#allocation6], %s202
        %s204 = sand.u32 %s80, 1
        %s205 = smul.addr %s204, 2
        %s206 = scalar_lea.vmem [#allocation5], %s205
        // Predicated region
        $region33: #{tpu_custom_call.1} parent=27 // pred_check
          %p207 = pneg %p93
        $region34: #{tpu_custom_call.1} parent=27 // pred_check_branch
          %209 = sbr.rel (%p207) target = $region36
        $region35: #{tpu_custom_call.1} parent=27 // pred_region
          %211 = dma.done %s203, 32
        $region36: #{tpu_custom_call.1} parent=27 // pred_fallthru
          _
        %s212 = sand.u32 %s50, 1
        %s213 = scalar_lea.sflag [#allocation4], %s212
        %s214 = sand.u32 %s50, 1
        %s215 = smul.addr %s214, 8
        %s216 = scalar_lea.vmem [#allocation3], %s215
        %p217 = pneg %p63
        %p218 = pneg %p60
        %s219 = sand.u32 %s80, 1
        %s220 = scalar_lea.sflag [#allocation6], %s219
        %s221 = sand.u32 %s80, 1
        %s222 = smul.addr %s221, 2
        %s223 = scalar_lea.vmem [#allocation5], %s222
        %p224 = pneg %p93
        %p225 = pneg %p90
        %p226 = pneg %p121
        %p227 = pneg %p118
        %p228 = scmp.lt.s32.totalorder %s24, 1
        %s229 = scalar_select %p228, %s24, 1
        %p230 = scmp.lt.s32.totalorder %s25, 0
        %s231 = scalar_select %p230, %s25, 0
        %s232 = sadd.s32 %s231, %s229
        %s233 = scalar_lea.vmem %s2, %s232
        %s234 = sadd.s32 %s25, %s26
        %s235 = sadd.s32 %s25, %s26
        %p236 = scmp.lt.s32.totalorder %s24, 1
        %s237 = scalar_select %p236, %s24, 1
        %p238 = scmp.lt.s32.totalorder %s25, 0
        %s239 = scalar_select %p238, %s25, 0
        %s240 = sadd.s32 %s239, %s237
        %s241 = scalar_lea.vmem %s2, %s240
        %p242 = scmp.eq.s32.totalorder %s26, 0
        // Predicated region
        $region37: #{tpu_custom_call.1} parent=27 // pred_check
          %p243 = pneg %p242
        $region38: #{tpu_custom_call.1} parent=27 // pred_check_branch
          %245 = sbr.rel (%p243) target = $region40
        $region39: #{tpu_custom_call.1} parent=27 // pred_region
          %246 = vst [vmem:[#allocation2] sm:$0x3] 0.0
        $region40: #{tpu_custom_call.1} parent=27 // pred_fallthru
          _
        %v247 = vld [vmem:[%s206] sm:$0x3]
        %v248 = vld [vmem:[%s196] sm:$0x3]
        %s249 = scalar_lea.vmem %s196, 2 [#allocation3]
        %v250 = vld [vmem:[%s249] sm:$0x3]
        %v251 = vmax.f32 %v248, %v250
        %vm252 = vcmp.eq.s32.totalorder %v247, 1
        %v253 = vsel %vm252, %v250, %v248
        %s254 = scalar_lea.vmem %s196, 4 [#allocation3]
        %v255 = vld [vmem:[%s254] sm:$0x3]
        %v256 = vmax.f32 %v251, %v255
        %vm257 = vcmp.eq.s32.totalorder %v247, 2
        %v258 = vsel %vm257, %v255, %v253
        %s259 = scalar_lea.vmem %s196, 6 [#allocation3]
        %v260 = vld [vmem:[%s259] sm:$0x3]
        %v261 = vmax.f32 %v256, %v260
        %vm262 = vcmp.eq.s32.totalorder %v247, 3
        %v263 = vsel %vm262, %v260, %v258
        %v264 = vsub.f32 %v248, %v261
        %v265 = vmul.f32 %v264, 1.442695
        %v266 = vpow.pop %v265
        %v267 = vadd.f32 %v266, 0.0
        %v268 = vsub.f32 %v250, %v261
        %v269 = vmul.f32 %v268, 1.442695
        %v270 = vpow.pop %v269
        %v271 = vadd.f32 %v267, %v270
        %v272 = vsub.f32 %v255, %v261
        %v273 = vmul.f32 %v272, 1.442695
        %v274 = vpow.pop %v273
        %v275 = vadd.f32 %v271, %v274
        %v276 = vsub.f32 %v260, %v261
        %v277 = vmul.f32 %v276, 1.442695
        %v278 = vpow.pop %v277
        %v279 = vadd.f32 %v275, %v278
        %v280 = vsub.f32 %v263, %v261
        %v281 = vlog2.pop %v279
        %v282 = vmul.f32 %v281, 0.6931472
        %v283 = vsub.f32 %v280, %v282
        %v284 = vmul.f32 %v283, 1.442695
        %v285 = vpow.pop %v284
        %vm286 = vcmp.eq.s32.totalorder %v247, 0
        %v287 = vsel %vm286, 0.25, 0.0
        %v288 = vsel %vm252, 0.75, %v287
        %v289 = vsel %vm257, 0.5, %v288
        %v290 = vsel %vm262, 0.5, %v289
        %v291 = vmul.f32 %v283, %v290
        %v292 = vsub.f32 1.0, %v285
        %v293 = vmul.f32 %v292, %v292
        %v294 = vmul.f32 %v293, %v291
        %v295 = vsub.f32 0.0, %v294
        %v296 = vld [vmem:[#allocation2] sm:$0x3]
        %v297 = vadd.f32 %v296, %v295
        %298 = vst [vmem:[#allocation2] sm:$0x3] %v297
        // Predicated region
        $region41: #{tpu_custom_call.1} parent=27 // pred_check
          %p299 = pneg %p242
        $region42: #{tpu_custom_call.1} parent=27 // pred_check_branch
          %301 = sbr.rel (%p299) target = $region44
        $region43: #{tpu_custom_call.1} parent=27 // pred_region
          %v302 = vld [vmem:[#allocation2] sm:$0x3]
          %vm303 = vcmask 1041408
          %v304 = vsel %vm303, %v302, 0.0
          %305 = vadd.xlane.f32.xlu0 %v304
          %v306 = vpop.xlane.xlu0 %305
          %v307 = vsel %vm303, %v306, 0.0
          %v308 = vrot.slane %v307, 4
          %v309 = vadd.f32 %v307, %v308
          %v310 = vrot.slane %v309, 2
          %v311 = vadd.f32 %v309, %v310
          %v312 = vrot.slane %v311, 1
          %v313 = vadd.f32 %v311, %v312
          %vm314 = vcmask 0
          %315 = vst.msk [vmem:[%s241] sm:$0x1] %vm314, %v313
        $region44: #{tpu_custom_call.1} parent=27 // pred_fallthru
          _
        %p316 = scmp.lt.s32.totalorder %s24, 1
        %s317 = scalar_select %p316, %s24, 1
        %p318 = scmp.lt.s32.totalorder %s25, 0
        %s319 = scalar_select %p318, %s25, 0
        %s320 = sadd.s32 %s319, %s317
        %s321 = scalar_lea.vmem %s2, %s320
        // Predicated region
        $region45: #{tpu_custom_call.1} parent=27 // pred_check
          %p322 = pneg %p118
        $region46: #{tpu_custom_call.1} parent=27 // pred_check_branch
          %324 = sbr.rel (%p322) target = $region48
        $region47: #{tpu_custom_call.1} parent=27 // pred_region
          _
        $region48: #{tpu_custom_call.1} parent=27 // pred_fallthru
          _
      $region28: #{tpu_custom_call.1} parent=5 // pred_fallthru
        _
      %p325 = scmp.le.s32.totalorder 2, %s14
      // Predicated region
      $region49: #{tpu_custom_call.1} parent=5 // pred_check
        %p326 = pneg %p325
      $region50: #{tpu_custom_call.1} parent=5 // pred_check_branch
        %328 = sbr.rel (%p326) target = $region52
      $region51: #{tpu_custom_call.1} parent=5 // pred_region
        %s329 = ssub.s32 %s14, 2
        // Predicated region
        $region53: #{tpu_custom_call.1} parent=51 // pred_check
          %p330 = pneg %p124
        $region54: #{tpu_custom_call.1} parent=51 // pred_check_branch
          %332 = sbr.rel (%p330) target = $region56
        $region55: #{tpu_custom_call.1} parent=51 // pred_region
          %p333 = scmp.lt.s32.totalorder %s27, 1
          %s334 = scalar_select %p333, %s27, 1
          %p335 = scmp.lt.s32.totalorder %s28, 0
          %s336 = scalar_select %p335, %s28, 0
          %s337 = sadd.s32 %s336, %s334
          %s338 = scalar_lea.vmem %s2, %s337
        $region56: #{tpu_custom_call.1} parent=51 // pred_fallthru
          _
      $region52: #{tpu_custom_call.1} parent=5 // pred_fallthru
        _
    $region6: #{tpu_custom_call.1} parent=1 // loop_footer
      %s18 = sadd.s32 1, %s14
    $region7: #{tpu_custom_call.1} parent=1 // loop_footer_branch
      %13 = sbr.rel target = $region3
    $region8: #{tpu_custom_call.1} parent=1 // loop_exit
      _
    %339 = vsyncpa [#allocation4], 1
    %s340 = scalar_lea.sflag [#allocation4], 1
    %341 = vsyncpa %s340, 1
    %342 = vsyncpa [#allocation6], 1
    %s343 = scalar_lea.sflag [#allocation6], 1
    %344 = vsyncpa %s343, 1

</llo_original>
